<compile_context>
chip_gen: v5e
topology: v5e:2x2
jax: 0.10.0
libtpu: 0.0.40
codegen_flags: <defaults>
</compile_context>

<pallas_src>
import numpy as np
import jax
import jax.numpy as jnp
from jax import lax
from jax.experimental import pallas as pl
from jax.experimental.pallas import tpu as pltpu

OUT_H = 224
OUT_W = 224


def _adaptive_pool_matrix(in_size: int, out_size: int) -> np.ndarray:
    """Exact nn.AdaptiveAvgPool2d averaging matrix P of shape (out_size, in_size)."""
    P = np.zeros((out_size, in_size), dtype=np.float64)
    for i in range(out_size):
        start = (i * in_size) // out_size
        a = (i + 1) * in_size
        end = -(-a // out_size)  # ceil((i+1)*in_size / out_size)
        P[i, start:end] = 1.0 / (end - start)
    return P.astype(np.float32)


def _pool_kernel(ph_b_ref, pwt_ref, x_ref, o_ref):
    # ph_b_ref: (C_blk, OUT_H, H)   bf16, constant index_map -> VMEM-resident all grid
    # pwt_ref : (W, OUT_W)          bf16, constant index_map -> VMEM-resident all grid
    # x_ref   : (C_blk, H, W)       original dtype (cast to bf16 in-kernel)
    # o_ref   : (C_blk, OUT_H, OUT_W) out_dtype
    c_blk, h, w = x_ref.shape
    out_w = pwt_ref.shape[1]

    # In-kernel bf16 cast (hidden under the tile DMA; no wrapper-side HBM pass).
    x2d = x_ref[...].astype(jnp.bfloat16).reshape(c_blk * h, w)

    # Step 1: one 2-D MXU matmul, shared RHS, M = c_blk*H, f32 accumulation.
    #   (c_blk*H, W) @ (W, OUT_W) -> (c_blk*H, OUT_W)
    t = jnp.dot(x2d, pwt_ref[...], preferred_element_type=jnp.float32)
    # bf16 re-round of the intermediate keeps the second pass on the bf16 MXU path
    # (~bf16-level error vs PyTorch f32; acceptable for this stage).
    t = t.astype(jnp.bfloat16).reshape(c_blk, h, out_w)

    # Step 2: batched MXU matmul against the resident pre-broadcast P_h
    #   (c_blk, OUT_H, H) @ (c_blk, H, OUT_W) -> (c_blk, OUT_H, OUT_W), f32 accumulation.
    out = lax.dot_general(
        ph_b_ref[...], t,
        dimension_numbers=(((2,), (1,)), ((0,), (0,))),
        preferred_element_type=jnp.float32,
    )

    o_ref[...] = out.astype(o_ref.dtype)


def _vmem_budget_and_limit() -> tuple[int, int]:
    """Generation-aware (budget_bytes, vmem_limit_bytes)."""
    try:
        cap = int(pltpu.get_tpu_info().vmem_capacity_bytes)
    except Exception:
        cap = 64 * 1024 * 1024  # conservative (v7x-sized) fallback
    vmem_limit = min(int(cap * 0.75), cap - 4 * 1024 * 1024)   # 96 MiB on 128 MiB parts, 48 MiB on v7x
    budget = int(cap * 0.55)                                    # ~70 MiB / ~35 MiB
    return budget, vmem_limit


def _pick_channel_block(N: int, C: int, H: int, W: int, x_bytes: int, out_bytes: int,
                        vmem_budget_bytes: int, min_grid_steps: int = 4) -> int:
    """Largest channel-block divisor of C that fits the VMEM budget, while keeping the
    grid deep enough (>= min_grid_steps) for v7x's two TensorCores and pipelining."""

    def est(cb: int) -> int:
        x_tile = 2 * cb * H * W * x_bytes            # double-buffered input tile (orig dtype)
        o_tile = 2 * cb * OUT_H * OUT_W * out_bytes  # double-buffered output tile
        inter = cb * H * OUT_W * (4 + 2)             # f32 step-1 result + bf16 copy for step 2
        ph_res = 2 * cb * OUT_H * H * 2              # resident bf16 pre-broadcast P_h
        pw_res = 2 * W * OUT_W * 2                   # resident bf16 P_w^T
        return x_tile + o_tile + inter + ph_res + pw_res

    divisors = [d for d in range(1, C + 1) if C % d == 0]
    fitting = [d for d in divisors if est(d) <= vmem_budget_bytes]
    if not fitting:
        raise ValueError(
            f"adaptive_avg_pool_224: even a single channel plane (H={H}, W={W}) does not fit "
            f"the {vmem_budget_bytes} byte VMEM budget; split the spatial dims or raise the limit."
        )
    fitting.sort(reverse=True)
    for d in fitting:                       # largest block that still leaves >= min_grid_steps steps
        if N * (C // d) >= min_grid_steps:
            return d
    for d in fitting:                       # else at least 2 steps if possible
        if N * (C // d) >= 2:
            return d
    return fitting[0]                       # else just the largest fitting block


def adaptive_avg_pool_224(x: jax.Array, out_dtype=jnp.bfloat16) -> jax.Array:
    """AdaptiveAvgPool2d((224, 224)) on an NCHW tensor via a Pallas TPU kernel.

    out_dtype defaults to bf16 (halves HBM writeback; the kernel is writeback-bound).
    Pass out_dtype=x.dtype for PyTorch-matching output dtype.
    """
    N, C, H, W = x.shape

    # Pad H to a multiple of 8 so the in-kernel (c_blk, H, W) -> (c_blk*H, W) reshape is
    # layout-trivial; padded rows get zero pooling weight, so the result is unchanged.
    H_pad = -(-H // 8) * 8
    if H_pad != H:
        x = jnp.pad(x, ((0, 0), (0, 0), (0, H_pad - H), (0, 0)))

    ph = _adaptive_pool_matrix(H, OUT_H)            # (224, H) f32
    if H_pad != H:
        ph = np.pad(ph, ((0, 0), (0, H_pad - H)))   # zero weight for padded rows
    pwt = _adaptive_pool_matrix(W, OUT_W).T         # (W, 224) f32

    budget, vmem_limit = _vmem_budget_and_limit()
    c_blk = _pick_channel_block(
        N, C, H_pad, W,
        x_bytes=jnp.dtype(x.dtype).itemsize,
        out_bytes=jnp.dtype(out_dtype).itemsize,
        vmem_budget_bytes=budget,
    )
    grid = (N, C // c_blk)

    # Pre-broadcast P_h once in the wrapper; constant index_map -> single DMA, VMEM-resident.
    ph_b = jnp.asarray(np.broadcast_to(ph[None], (c_blk, OUT_H, H_pad)), dtype=jnp.bfloat16)
    pwt_j = jnp.asarray(pwt, dtype=jnp.bfloat16)

    out = pl.pallas_call(
        _pool_kernel,
        out_shape=jax.ShapeDtypeStruct((N, C, OUT_H, OUT_W), out_dtype),
        grid=grid,
        in_specs=[
            # Pooling matrices: constant block index -> never re-DMA'd across the grid.
            pl.BlockSpec((c_blk, OUT_H, H_pad), lambda n, cb: (0, 0, 0)),
            pl.BlockSpec((W, OUT_W), lambda n, cb: (0, 0)),
            # One sample, one channel block per grid step (batch dim squeezed away).
            pl.BlockSpec((None, c_blk, H_pad, W), lambda n, cb: (n, cb, 0, 0)),
        ],
        out_specs=pl.BlockSpec((None, c_blk, OUT_H, OUT_W), lambda n, cb: (n, cb, 0, 0)),
        compiler_params=pltpu.CompilerParams(
            dimension_semantics=("parallel", "parallel"),
            vmem_limit_bytes=vmem_limit,
        ),
    )(ph_b, pwt_j, x)
    return out


def convnet2_forward(x: jax.Array, out_dtype=jnp.bfloat16) -> jax.Array:
    """convNet2.forward: avgpl stage implemented as a Pallas kernel.

    TODO(synk): the ResNet submodule (self.rsn) is externally injected with no
    architecture in the source file, so only the adaptive-average-pool output is returned.
    """
    return adaptive_avg_pool_224(x, out_dtype=out_dtype)


if __name__ == "__main__":
    key = jax.random.PRNGKey(0)
    N, C, H, W = 2, 4, 16, 16
    x = jax.random.normal(key, (N, C, H, W), dtype=jnp.float32)

    out = convnet2_forward(x)
    out = jax.block_until_ready(out)
    assert out.shape == (N, C, OUT_H, OUT_W), out.shape

    # Pure-JAX f32 reference of AdaptiveAvgPool2d((224, 224)).
    ph_f32 = jnp.asarray(_adaptive_pool_matrix(H, OUT_H))   # (224, H)
    pw_f32 = jnp.asarray(_adaptive_pool_matrix(W, OUT_W))   # (224, W)
    ref = jnp.einsum("oh,nchw,pw->ncop", ph_f32, x, pw_f32)

    # Kernel runs bf16 MXU inputs / bf16 output with f32 accumulation -> bf16-level tolerance.
    err = jnp.abs(out.astype(jnp.float32) - ref)
    ok = bool(jnp.all(err <= 5e-2 + 5e-2 * jnp.abs(ref)))
    assert ok, float(jnp.max(err))

    print("KERNEL_OK")
</pallas_src>

<mosaic_0001>
module attributes {stable_mosaic.version = 11 : i64} {
  func.func @_pool_kernel(%arg0: i32, %arg1: i32, %arg2: memref<2x224x16xbf16, #tpu.memory_space<vmem>>, %arg3: memref<16x224xbf16, #tpu.memory_space<vmem>>, %arg4: memref<1x2x16x16xf32, #tpu.memory_space<vmem>>, %arg5: memref<1x2x224x224xbf16, #tpu.memory_space<vmem>>) attributes {dimension_semantics = [#tpu.dimension_semantics<parallel>, #tpu.dimension_semantics<parallel>], iteration_bounds = array<i64: 2, 2>, scalar_prefetch = 0 : i64, scratch_operands = 0 : i64, tpu.core_type = #tpu.core_type<tc>, window_params = [{pipeline_mode = #tpu.pipeline_mode<synchronous>, transform_indices = @transform_0, window_bounds = array<i64: 2, 224, 16>}, {pipeline_mode = #tpu.pipeline_mode<synchronous>, transform_indices = @transform_1, window_bounds = array<i64: 16, 224>}, {transform_indices = @transform_2, window_bounds = array<i64: 1, 2, 16, 16>}, {transform_indices = @transform_3, window_bounds = array<i64: 1, 2, 224, 224>}]} {
    %c0 = arith.constant 0 : index
    %c0_0 = arith.constant 0 : index
    %c0_1 = arith.constant 0 : index
    %c0_2 = arith.constant 0 : index
    %0 = vector.load %arg4[%c0, %c0_0, %c0_1, %c0_2] : memref<1x2x16x16xf32, #tpu.memory_space<vmem>>, vector<1x2x16x16xf32>
    %1 = vector.shape_cast %0 : vector<1x2x16x16xf32> to vector<2x16x16xf32>
    %2 = arith.truncf %1 : vector<2x16x16xf32> to vector<2x16x16xbf16>
    %3 = vector.shape_cast %2 : vector<2x16x16xbf16> to vector<32x16xbf16>
    %c0_3 = arith.constant 0 : index
    %c0_4 = arith.constant 0 : index
    %4 = vector.load %arg3[%c0_3, %c0_4] : memref<16x224xbf16, #tpu.memory_space<vmem>>, vector<16x224xbf16>
    %cst = arith.constant dense<0.000000e+00> : vector<32x224xf32>
    %5 = tpu.matmul %3, %4, %cst {dimension_numbers = #tpu.dot_dimension_numbers<[1], [0], [0], [1], [0, 0, 1, 1], [], []>} : vector<32x16xbf16>, vector<16x224xbf16>, vector<32x224xf32> -> vector<32x224xf32>
    %6 = arith.truncf %5 : vector<32x224xf32> to vector<32x224xbf16>
    %7 = vector.shape_cast %6 : vector<32x224xbf16> to vector<2x16x224xbf16>
    %c0_5 = arith.constant 0 : index
    %c0_6 = arith.constant 0 : index
    %c0_7 = arith.constant 0 : index
    %8 = vector.load %arg2[%c0_5, %c0_6, %c0_7] : memref<2x224x16xbf16, #tpu.memory_space<vmem>>, vector<2x224x16xbf16>
    %cst_8 = arith.constant dense<0.000000e+00> : vector<2x224x224xf32>
    %9 = tpu.matmul %8, %7, %cst_8 {dimension_numbers = #tpu.dot_dimension_numbers<[2], [1], [1], [2], [0, 0, 0, 1, 1, 2], [0], [0]>} : vector<2x224x16xbf16>, vector<2x16x224xbf16>, vector<2x224x224xf32> -> vector<2x224x224xf32>
    %10 = arith.truncf %9 : vector<2x224x224xf32> to vector<2x224x224xbf16>
    %c0_9 = arith.constant 0 : index
    %c0_10 = arith.constant 0 : index
    %c0_11 = arith.constant 0 : index
    %c0_12 = arith.constant 0 : index
    %11 = vector.load %arg5[%c0_9, %c0_10, %c0_11, %c0_12] : memref<1x2x224x224xbf16, #tpu.memory_space<vmem>>, vector<1x2x224x224xbf16>
    %12 = vector.shape_cast %11 : vector<1x2x224x224xbf16> to vector<2x224x224xbf16>
    %13 = vector.shape_cast %10 : vector<2x224x224xbf16> to vector<1x2x224x224xbf16>
    tpu.vector_store %arg5[%c0_9, %c0_10, %c0_11, %c0_12], %13 {strides = array<i32>} : memref<1x2x224x224xbf16, #tpu.memory_space<vmem>>, vector<1x2x224x224xbf16>,
    return
  }
  func.func @transform_0(%arg0: i32, %arg1: i32) -> (i32, i32, i32) {
    %c0_i32 = arith.constant 0 : i32
    %c0_i32_0 = arith.constant 0 : i32
    %c0_i32_1 = arith.constant 0 : i32
    %c0_i32_2 = arith.constant 0 : i32
    return %c0_i32, %c0_i32_0, %c0_i32_1 : i32, i32, i32
  }
  func.func @transform_1(%arg0: i32, %arg1: i32) -> (i32, i32) {
    %c0_i32 = arith.constant 0 : i32
    %c0_i32_0 = arith.constant 0 : i32
    %c0_i32_1 = arith.constant 0 : i32
    return %c0_i32, %c0_i32_0 : i32, i32
  }
  func.func @transform_2(%arg0: i32, %arg1: i32) -> (i32, i32, i32, i32) {
    %c0_i32 = arith.constant 0 : i32
    %c0_i32_0 = arith.constant 0 : i32
    %c0_i32_1 = arith.constant 0 : i32
    return %arg0, %arg1, %c0_i32, %c0_i32_0 : i32, i32, i32, i32
  }
  func.func @transform_3(%arg0: i32, %arg1: i32) -> (i32, i32, i32, i32) {
    %c0_i32 = arith.constant 0 : i32
    %c0_i32_0 = arith.constant 0 : i32
    %c0_i32_1 = arith.constant 0 : i32
    return %arg0, %arg1, %c0_i32, %c0_i32_0 : i32, i32, i32, i32
  }
}

</mosaic_0001>

<llo_original>
// kernel: tpu_custom_call.1
$region0: #{tpu_custom_call.1}
  #allocation0 [shape = 'u32[]', space=smem, size = 0x4, offset = 0x4, fixed_abs, tag = 'smem constant byte address 0x4 - core index']
  #allocation1 [shape = 'u32[72,128]{1,0:T(1,128)}', space=vmem, size = 0x9000, scoped, tag = 'internal scratch']
  %s0 = inlined_call_operand.vmem [shape: bf16[2,224,16], index: 0, kind: input, shape index: {}]
  %s1 = inlined_call_operand.vmem [shape: bf16[16,224], index: 1, kind: input, shape index: {}]
  %s2 = inlined_call_operand.vmem [shape: f32[2,4,16,16], index: 2, kind: input, shape index: {}]
  %s3 = inlined_call_operand.hbm [shape: bf16[2,4,224,224], index: 3, kind: output, shape index: {}]
  %s4 = sld [smem:[#allocation0]]
  $region45: #{tpu_custom_call.1} parent=0
    _
  %s6 = ssub.s32 1, %s4
  %s7 = scalar_select 0, %s6, %s4
  $region1: #{tpu_custom_call.1} parent=0
    #allocation2 [shape = 'u8[458752]{0}', space=vmem, size = 0x70000, scoped, tag = 'output window, operand 0']
    #allocation3 [shape = 's32[2]{0}', space=sflag, size = 0x8, scoped, tag = 'scoped memory for tpu_custom_call.1']
    %8 = vsyncpa [#allocation3], 0
    %s9 = scalar_lea.sflag [#allocation3], 1
    %10 = vsyncpa %s9, 0
    loop: start=0, step=1, limit=6
    $region2: #{tpu_custom_call.1} parent=1 // loop_pre_header
      _
    $region3: #{tpu_custom_call.1} parent=1 // loop_header
      %s12 = sphi 0, %s16
      %p13 = scmp.ge.s32.totalorder %s12, 6
      %s19 = sphi 0, %s31
      %s20 = sphi 0, %s27
      %s21 = sphi 0, %s19
      %s22 = sphi 0, %s20
      %s23 = sphi 0, %s21
      %s24 = sphi 0, %s22
      %s32 = sphi 0, %s32
      %s34 = sphi 0, %s32
      %s35 = sphi 0, %s34
      %s49 = sphi 0, %s35
      %s53 = sphi 0, %s53
      %s55 = sphi 0, %s53
      %s56 = sphi 0, %s55
      %s70 = sphi 0, %s56
      %s78 = sphi 0, %s80
      %s81 = sphi 0, %s78
      %s82 = sphi 0, %s81
      %s98 = sphi 0, %s82
      %s106 = sphi 0, %s108
      %s109 = sphi 0, %s106
      %s110 = sphi 0, %s109
      %s126 = sphi 0, %s110
    $region4: #{tpu_custom_call.1} parent=1 // loop_header_branch
      %15 = sbr.rel (%p13) target = $region8
    $region5: #{tpu_custom_call.1} parent=1 // loop_body
      %s17 = ssub.s32 %s12, 1
      %s18 = ssub.s32 %s12, 2
      %s25 = sadd.s32 1, %s20
      %p26 = scmp.ge.s32.totalorder %s25, 2
      %s27 = scalar_select %p26, 0, %s25
      %s28 = sadd.s32 1, %s19
      %s29 = scalar_select %p26, %s28, %s19
      %p30 = scmp.ge.s32.totalorder %s29, 2
      %s31 = scalar_select %p30, 0, %s29
      %s33 = sadd.s32 %s32, 1
      %p36 = scmp.eq.s32.totalorder %s12, 3
      %p37 = scmp.ne.s32.totalorder %s32, %s34
      %p38 = scmp.eq.s32.totalorder %s12, 0
      %p39 = por %p37, %p38
      %p40 = scmp.ne.s32.totalorder %s32, %s34
      %p41 = scmp.eq.s32.totalorder %s17, 3
      %p42 = por %p40, %p41
      %p43 = scmp.ne.s32.totalorder %s34, %s35
      %p44 = scmp.eq.s32.totalorder %s17, 0
      %p45 = por %p43, %p44
      %p46 = scmp.ne.s32.totalorder %s34, %s35
      %p47 = scmp.eq.s32.totalorder %s18, 3
      %p48 = por %p46, %p47
      %p50 = scmp.ne.s32.totalorder %s35, %s49
      %p51 = scmp.eq.s32.totalorder %s18, 0
      %p52 = por %p50, %p51
      %s54 = sadd.s32 %s53, 1
      %p57 = scmp.eq.s32.totalorder %s12, 3
      %p58 = scmp.ne.s32.totalorder %s53, %s55
      %p59 = scmp.eq.s32.totalorder %s12, 0
      %p60 = por %p58, %p59
      %p61 = scmp.ne.s32.totalorder %s53, %s55
      %p62 = scmp.eq.s32.totalorder %s17, 3
      %p63 = por %p61, %p62
      %p64 = scmp.ne.s32.totalorder %s55, %s56
      %p65 = scmp.eq.s32.totalorder %s17, 0
      %p66 = por %p64, %p65
      %p67 = scmp.ne.s32.totalorder %s55, %s56
      %p68 = scmp.eq.s32.totalorder %s18, 3
      %p69 = por %p67, %p68
      %p71 = scmp.ne.s32.totalorder %s56, %s70
      %p72 = scmp.eq.s32.totalorder %s18, 0
      %p73 = por %p71, %p72
      %s74 = ssub.s32 %s19, %s31
      %s75 = ssub.s32 %s20, %s27
      %s76 = sor.u32 %s74, %s75
      %p77 = scmp.eq.s32.totalorder %s76, 0
      %s79 = sadd.s32 %s78, 1
      %s80 = scalar_select %p77, %s78, %s79
      %p83 = pneg %p77
      %p84 = scmp.eq.s32.totalorder %s12, 3
      %p85 = por %p83, %p84
      %p86 = scmp.ne.s32.totalorder %s78, %s81
      %p87 = scmp.eq.s32.totalorder %s12, 0
      %p88 = por %p86, %p87
      %p89 = scmp.ne.s32.totalorder %s78, %s81
      %p90 = scmp.eq.s32.totalorder %s17, 3
      %p91 = por %p89, %p90
      %p92 = scmp.ne.s32.totalorder %s81, %s82
      %p93 = scmp.eq.s32.totalorder %s17, 0
      %p94 = por %p92, %p93
      %p95 = scmp.ne.s32.totalorder %s81, %s82
      %p96 = scmp.eq.s32.totalorder %s18, 3
      %p97 = por %p95, %p96
      %p99 = scmp.ne.s32.totalorder %s82, %s98
      %p100 = scmp.eq.s32.totalorder %s18, 0
      %p101 = por %p99, %p100
      %s102 = ssub.s32 %s19, %s31
      %s103 = ssub.s32 %s20, %s27
      %s104 = sor.u32 %s102, %s103
      %p105 = scmp.eq.s32.totalorder %s104, 0
      %s107 = sadd.s32 %s106, 1
      %s108 = scalar_select %p105, %s106, %s107
      %p111 = pneg %p105
      %p112 = scmp.eq.s32.totalorder %s12, 3
      %p113 = por %p111, %p112
      %p114 = scmp.ne.s32.totalorder %s106, %s109
      %p115 = scmp.eq.s32.totalorder %s12, 0
      %p116 = por %p114, %p115
      %p117 = scmp.ne.s32.totalorder %s106, %s109
      %p118 = scmp.eq.s32.totalorder %s17, 3
      %p119 = por %p117, %p118
      %p120 = scmp.ne.s32.totalorder %s109, %s110
      %p121 = scmp.eq.s32.totalorder %s17, 0
      %p122 = por %p120, %p121
      %p123 = scmp.ne.s32.totalorder %s109, %s110
      %p124 = scmp.eq.s32.totalorder %s18, 3
      %p125 = por %p123, %p124
      %p127 = scmp.ne.s32.totalorder %s110, %s126
      %p128 = scmp.eq.s32.totalorder %s18, 0
      %p129 = por %p127, %p128
      %p130 = scmp.le.s32.totalorder 1, %s12
      %p131 = scmp.lt.s32.totalorder %s12, 5
      %p132 = pnand %p130, %p131
      %p133 = pneg %p132
      // Predicated region
      $region9: #{tpu_custom_call.1} parent=5 // pred_check
        _
      $region10: #{tpu_custom_call.1} parent=5 // pred_check_branch
        %135 = sbr.rel (%p132) target = $region12
      $region11: #{tpu_custom_call.1} parent=5 // pred_region
        %s136 = ssub.s32 %s12, 1
        // Predicated region
        $region13: #{tpu_custom_call.1} parent=11 // pred_check
          %p137 = pneg %p45
        $region14: #{tpu_custom_call.1} parent=11 // pred_check_branch
          %139 = sbr.rel (%p137) target = $region16
        $region15: #{tpu_custom_call.1} parent=11 // pred_region
          _
        $region16: #{tpu_custom_call.1} parent=11 // pred_fallthru
          _
        // Predicated region
        $region17: #{tpu_custom_call.1} parent=11 // pred_check
          %p140 = pneg %p66
        $region18: #{tpu_custom_call.1} parent=11 // pred_check_branch
          %142 = sbr.rel (%p140) target = $region20
        $region19: #{tpu_custom_call.1} parent=11 // pred_region
          _
        $region20: #{tpu_custom_call.1} parent=11 // pred_fallthru
          _
      $region12: #{tpu_custom_call.1} parent=5 // pred_fallthru
        _
      %p143 = scmp.lt.s32.totalorder %s12, 4
      // Predicated region
      $region21: #{tpu_custom_call.1} parent=5 // pred_check
        %p144 = pneg %p143
      $region22: #{tpu_custom_call.1} parent=5 // pred_check_branch
        %146 = sbr.rel (%p144) target = $region24
      $region23: #{tpu_custom_call.1} parent=5 // pred_region
        // Predicated region
        $region25: #{tpu_custom_call.1} parent=23 // pred_check
          %p147 = pneg %p88
        $region26: #{tpu_custom_call.1} parent=23 // pred_check_branch
          %149 = sbr.rel (%p147) target = $region28
        $region27: #{tpu_custom_call.1} parent=23 // pred_region
          %s150 = smul.u32 2, %s20
          %p151 = scmp.lt.s32.totalorder %s19, 1
          %s152 = scalar_select %p151, %s19, 1
          %p153 = scmp.lt.s32.totalorder %s150, 3
          %s154 = scalar_select %p153, %s150, 3
          %s155 = smul.addr %s154, 2
          %s156 = smul.addr %s152, 8
          %s157 = sadd.s32 %s155, %s156
          %s158 = smul.addr %s157, 8
          %s159 = scalar_lea.vmem %s2, %s158
          %s160 = smul.u32 2, %s20
        $region28: #{tpu_custom_call.1} parent=23 // pred_fallthru
          _
      $region24: #{tpu_custom_call.1} parent=5 // pred_fallthru
        _
      %p161 = scmp.le.s32.totalorder 1, %s12
      %p162 = scmp.lt.s32.totalorder %s12, 5
      %p163 = pnand %p161, %p162
      %p164 = pneg %p163
      // Predicated region
      $region29: #{tpu_custom_call.1} parent=5 // pred_check
        _
      $region30: #{tpu_custom_call.1} parent=5 // pred_check_branch
        %166 = sbr.rel (%p163) target = $region32
      $region31: #{tpu_custom_call.1} parent=5 // pred_region
        %s167 = ssub.s32 %s12, 1
        %p168 = pneg %p45
        %p169 = pneg %p42
        %p170 = pneg %p66
        %p171 = pneg %p63
        %s172 = smul.u32 2, %s22
        %p173 = scmp.lt.s32.totalorder %s21, 1
        %s174 = scalar_select %p173, %s21, 1
        %p175 = scmp.lt.s32.totalorder %s172, 3
        %s176 = scalar_select %p175, %s172, 3
        %s177 = smul.addr %s176, 2
        %s178 = smul.addr %s174, 8
        %s179 = sadd.s32 %s177, %s178
        %s180 = smul.addr %s179, 8
        %s181 = scalar_lea.vmem %s2, %s180
        %p182 = pneg %p94
        %p183 = pneg %p91
        %p184 = pneg %p122
        %p185 = pneg %p119
        %s186 = sand.u32 %s109, 1
        %s187 = scalar_lea.sflag [#allocation3], %s186
        %s188 = sand.u32 %s109, 1
        %s189 = smul.addr %s188, 448
        %s190 = scalar_lea.vmem [#allocation2], %s189
        %s191 = smul.u32 2, %s22
        %p192 = scmp.lt.s32.totalorder %s21, 1
        %s193 = scalar_select %p192, %s21, 1
        %p194 = scmp.lt.s32.totalorder %s191, 3
        %s195 = scalar_select %p194, %s191, 3
        %s196 = smul.addr %s195, 2
        %s197 = smul.addr %s193, 8
        %s198 = sadd.s32 %s196, %s197
        %s199 = smul.addr %s198, 8
        %s200 = scalar_lea.vmem %s2, %s199
        %s201 = smul.u32 2, %s22
        %s202 = smul.u32 2, %s22
        %v204 = vld [vmem:[%s200] sm:$0xff]
        %v205 = vld [vmem:[%s200 + $0x8] sm:$0xff]
        %v206 = vld [vmem:[%s200 + $0x10] sm:$0xff]
        %v207 = vld [vmem:[%s200 + $0x18] sm:$0xff]
        %v208 = vpack.c.bf16 %v204, %v204
        %v209 = vpack.c.bf16 %v205, %v205
        %v210 = vpack.c.bf16 %v206, %v206
        %v211 = vpack.c.bf16 %v207, %v207
        %v212 = vld [vmem:[%s1] sm:$0xff]
        %v213 = vld [vmem:[%s1 + $0x8] sm:$0xff]
        %v218 = vunpack.c.l.b16 %v208
        %v219 = vunpack.c.l.b16 %v209
        %v220 = vunpack.c.l.b16 %v210
        %v221 = vunpack.c.l.b16 %v211
        %v222 = vpack.c.b16 %v219, %v218
        %v223 = vpack.c.b16 %v221, %v220
        %v226 = vunpack.c.l.b16 %v212
        %v227 = vunpack.c.h.b16 %v212
        %v228 = vunpack.c.l.b16 %v213
        %v229 = vunpack.c.h.b16 %v213
        %v230 = vpack.c.b16 %v228, %v226
        %v231 = vpack.c.b16 %v229, %v227
        %vm234 = vcmask 130048
        %v236 = vsel %vm234, %v222, 0
        %v239 = vsel %vm234, %v223, 0
        %241 = vmatpush.bf16.msra.mxu0 0
        %242 = vmatpush.bf16.msra.mxu0 0
        %243 = vmatpush.bf16.msra.mxu0 0
        %244 = vmatpush.bf16.msra.mxu0 0
        %245 = vmatpush.bf16.msra.mxu0 0
        %246 = vmatpush.bf16.msra.mxu0 0
        %247 = vmatpush.bf16.msra.mxu0 0
        %248 = vmatpush.bf16.msra.mxu0 %v230
        %249 = vmatmul.bf16.gmra.mxu0 %v236
        %v250 = vpop.f32.mrf.mxu0
        %v251 = vadd.f32 0.0, %v250
        %v252 = vpop.f32.mrf.mxu0
        %v253 = vadd.f32 0.0, %v252
        %254 = vmatmul.bf16.gmra.mxu0 %v239
        %v255 = vpop.f32.mrf.mxu0
        %v256 = vadd.f32 0.0, %v255
        %v257 = vpop.f32.mrf.mxu0
        %v258 = vadd.f32 0.0, %v257
        %259 = vdwg.mxu0
        %260 = vmatpush.bf16.msra.mxu0 0
        %261 = vmatpush.bf16.msra.mxu0 0
        %262 = vmatpush.bf16.msra.mxu0 0
        %263 = vmatpush.bf16.msra.mxu0 0
        %264 = vmatpush.bf16.msra.mxu0 0
        %265 = vmatpush.bf16.msra.mxu0 0
        %266 = vmatpush.bf16.msra.mxu0 0
        %267 = vmatpush.bf16.msra.mxu0 %v231
        %268 = vmatmul.bf16.gmra.mxu0 %v236
        %v269 = vpop.f32.mrf.mxu0
        %v270 = vadd.f32 0.0, %v269
        %v271 = vpop.f32.mrf.mxu0
        %v272 = vadd.f32 0.0, %v271
        %273 = vmatmul.bf16.gmra.mxu0 %v239
        %v274 = vpop.f32.mrf.mxu0
        %v275 = vadd.f32 0.0, %v274
        %v276 = vpop.f32.mrf.mxu0
        %v277 = vadd.f32 0.0, %v276
        %278 = vdwg.mxu0
        %v279 = vpack.c.bf16 %v270, %v251
        %v280 = vpack.c.bf16 %v272, %v253
        %v281 = vpack.c.bf16 %v275, %v256
        %v282 = vpack.c.bf16 %v277, %v258
        %v283 = vld [vmem:[%s0] sm:$0xf]
        %v284 = vld [vmem:[%s0 + $0x4] sm:$0xf]
        %v285 = vld [vmem:[%s0 + $0x8] sm:$0xf]
        %v286 = vld [vmem:[%s0 + $0xc] sm:$0xf]
        %v287 = vld [vmem:[%s0 + $0x10] sm:$0xf]
        %v288 = vld [vmem:[%s0 + $0x14] sm:$0xf]
        %v289 = vld [vmem:[%s0 + $0x18] sm:$0xf]
        %v290 = vld [vmem:[%s0 + $0x1c] sm:$0xf]
        %v291 = vld [vmem:[%s0 + $0x20] sm:$0xf]
        %v292 = vld [vmem:[%s0 + $0x24] sm:$0xf]
        %v293 = vld [vmem:[%s0 + $0x28] sm:$0xf]
        %v294 = vld [vmem:[%s0 + $0x2c] sm:$0xf]
        %v295 = vld [vmem:[%s0 + $0x30] sm:$0xf]
        %v296 = vld [vmem:[%s0 + $0x34] sm:$0xf]
        %v297 = vld [vmem:[%s0 + $0x38] sm:$0xf]
        %v298 = vld [vmem:[%s0 + $0x3c] sm:$0xf]
        %v299 = vld [vmem:[%s0 + $0x40] sm:$0xf]
        %v300 = vld [vmem:[%s0 + $0x44] sm:$0xf]
        %v301 = vld [vmem:[%s0 + $0x48] sm:$0xf]
        %v302 = vld [vmem:[%s0 + $0x4c] sm:$0xf]
        %v303 = vld [vmem:[%s0 + $0x50] sm:$0xf]
        %v304 = vld [vmem:[%s0 + $0x54] sm:$0xf]
        %v305 = vld [vmem:[%s0 + $0x58] sm:$0xf]
        %v306 = vld [vmem:[%s0 + $0x5c] sm:$0xf]
        %v307 = vld [vmem:[%s0 + $0x60] sm:$0xf]
        %v308 = vld [vmem:[%s0 + $0x64] sm:$0xf]
        %v309 = vld [vmem:[%s0 + $0x68] sm:$0xf]
        %v310 = vld [vmem:[%s0 + $0x6c] sm:$0xf]
        %v311 = vld [vmem:[%s0 + $0x70] sm:$0xf]
        %v312 = vld [vmem:[%s0 + $0x74] sm:$0xf]
        %v313 = vld [vmem:[%s0 + $0x78] sm:$0xf]
        %v314 = vld [vmem:[%s0 + $0x7c] sm:$0xf]
        %v315 = vld [vmem:[%s0 + $0x80] sm:$0xf]
        %v316 = vld [vmem:[%s0 + $0x84] sm:$0xf]
        %v317 = vld [vmem:[%s0 + $0x88] sm:$0xf]
        %v318 = vld [vmem:[%s0 + $0x8c] sm:$0xf]
        %v319 = vld [vmem:[%s0 + $0x90] sm:$0xf]
        %v320 = vld [vmem:[%s0 + $0x94] sm:$0xf]
        %v321 = vld [vmem:[%s0 + $0x98] sm:$0xf]
        %v322 = vld [vmem:[%s0 + $0x9c] sm:$0xf]
        %v323 = vld [vmem:[%s0 + $0xa0] sm:$0xf]
        %v324 = vld [vmem:[%s0 + $0xa4] sm:$0xf]
        %v325 = vld [vmem:[%s0 + $0xa8] sm:$0xf]
        %v326 = vld [vmem:[%s0 + $0xac] sm:$0xf]
        %v327 = vld [vmem:[%s0 + $0xb0] sm:$0xf]
        %v328 = vld [vmem:[%s0 + $0xb4] sm:$0xf]
        %v329 = vld [vmem:[%s0 + $0xb8] sm:$0xf]
        %v330 = vld [vmem:[%s0 + $0xbc] sm:$0xf]
        %v331 = vld [vmem:[%s0 + $0xc0] sm:$0xf]
        %v332 = vld [vmem:[%s0 + $0xc4] sm:$0xf]
        %v333 = vld [vmem:[%s0 + $0xc8] sm:$0xf]
        %v334 = vld [vmem:[%s0 + $0xcc] sm:$0xf]
        %v335 = vld [vmem:[%s0 + $0xd0] sm:$0xf]
        %v336 = vld [vmem:[%s0 + $0xd4] sm:$0xf]
        %v337 = vld [vmem:[%s0 + $0xd8] sm:$0xf]
        %v338 = vld [vmem:[%s0 + $0xdc] sm:$0xf]
        %v367 = vunpack.c.l.b16 %v283
        %v368 = vunpack.c.l.b16 %v284
        %v369 = vunpack.c.l.b16 %v285
        %v370 = vunpack.c.l.b16 %v286
        %v371 = vunpack.c.l.b16 %v287
        %v372 = vunpack.c.l.b16 %v288
        %v373 = vunpack.c.l.b16 %v289
        %v374 = vunpack.c.l.b16 %v290
        %v375 = vunpack.c.l.b16 %v291
        %v376 = vunpack.c.l.b16 %v292
        %v377 = vunpack.c.l.b16 %v293
        %v378 = vunpack.c.l.b16 %v294
        %v379 = vunpack.c.l.b16 %v295
        %v380 = vunpack.c.l.b16 %v296
        %v381 = vunpack.c.l.b16 %v297
        %v382 = vunpack.c.l.b16 %v298
        %v383 = vunpack.c.l.b16 %v299
        %v384 = vunpack.c.l.b16 %v300
        %v385 = vunpack.c.l.b16 %v301
        %v386 = vunpack.c.l.b16 %v302
        %v387 = vunpack.c.l.b16 %v303
        %v388 = vunpack.c.l.b16 %v304
        %v389 = vunpack.c.l.b16 %v305
        %v390 = vunpack.c.l.b16 %v306
        %v391 = vunpack.c.l.b16 %v307
        %v392 = vunpack.c.l.b16 %v308
        %v393 = vunpack.c.l.b16 %v309
        %v394 = vunpack.c.l.b16 %v310
        %v395 = vpack.c.b16 %v368, %v367
        %v396 = vpack.c.b16 %v370, %v369
        %v397 = vpack.c.b16 %v372, %v371
        %v398 = vpack.c.b16 %v374, %v373
        %v399 = vpack.c.b16 %v376, %v375
        %v400 = vpack.c.b16 %v378, %v377
        %v401 = vpack.c.b16 %v380, %v379
        %v402 = vpack.c.b16 %v382, %v381
        %v403 = vpack.c.b16 %v384, %v383
        %v404 = vpack.c.b16 %v386, %v385
        %v405 = vpack.c.b16 %v388, %v387
        %v406 = vpack.c.b16 %v390, %v389
        %v407 = vpack.c.b16 %v392, %v391
        %v408 = vpack.c.b16 %v394, %v393
        %v411 = vunpack.c.l.b16 %v279
        %v412 = vunpack.c.h.b16 %v279
        %v413 = vunpack.c.l.b16 %v280
        %v414 = vunpack.c.h.b16 %v280
        %v415 = vpack.c.b16 %v413, %v411
        %v416 = vpack.c.b16 %v414, %v412
        %v420 = vsel %vm234, %v395, 0
        %v423 = vsel %vm234, %v396, 0
        %v426 = vsel %vm234, %v397, 0
        %v429 = vsel %vm234, %v398, 0
        %v432 = vsel %vm234, %v399, 0
        %v435 = vsel %vm234, %v400, 0
        %v438 = vsel %vm234, %v401, 0
        %v441 = vsel %vm234, %v402, 0
        %v444 = vsel %vm234, %v403, 0
        %v447 = vsel %vm234, %v404, 0
        %v450 = vsel %vm234, %v405, 0
        %v453 = vsel %vm234, %v406, 0
        %v456 = vsel %vm234, %v407, 0
        %v459 = vsel %vm234, %v408, 0
        %461 = vmatpush.bf16.msra.mxu0 0
        %462 = vmatpush.bf16.msra.mxu0 0
        %463 = vmatpush.bf16.msra.mxu0 0
        %464 = vmatpush.bf16.msra.mxu0 0
        %465 = vmatpush.bf16.msra.mxu0 0
        %466 = vmatpush.bf16.msra.mxu0 0
        %467 = vmatpush.bf16.msra.mxu0 0
        %468 = vmatpush.bf16.msra.mxu0 %v415
        %469 = vmatmul.bf16.gmra.mxu0 %v420
        %v470 = vpop.f32.mrf.mxu0
        %v471 = vadd.f32 0.0, %v470
        %v472 = vpop.f32.mrf.mxu0
        %v473 = vadd.f32 0.0, %v472
        %474 = vmatmul.bf16.gmra.mxu0 %v423
        %v475 = vpop.f32.mrf.mxu0
        %v476 = vadd.f32 0.0, %v475
        %v477 = vpop.f32.mrf.mxu0
        %v478 = vadd.f32 0.0, %v477
        %479 = vmatmul.bf16.gmra.mxu0 %v426
        %v480 = vpop.f32.mrf.mxu0
        %v481 = vadd.f32 0.0, %v480
        %v482 = vpop.f32.mrf.mxu0
        %v483 = vadd.f32 0.0, %v482
        %484 = vmatmul.bf16.gmra.mxu0 %v429
        %v485 = vpop.f32.mrf.mxu0
        %v486 = vadd.f32 0.0, %v485
        %v487 = vpop.f32.mrf.mxu0
        %v488 = vadd.f32 0.0, %v487
        %489 = vmatmul.bf16.gmra.mxu0 %v432
        %v490 = vpop.f32.mrf.mxu0
        %v491 = vadd.f32 0.0, %v490
        %v492 = vpop.f32.mrf.mxu0
        %v493 = vadd.f32 0.0, %v492
        %494 = vmatmul.bf16.gmra.mxu0 %v435
        %v495 = vpop.f32.mrf.mxu0
        %v496 = vadd.f32 0.0, %v495
        %v497 = vpop.f32.mrf.mxu0
        %v498 = vadd.f32 0.0, %v497
        %499 = vmatmul.bf16.gmra.mxu0 %v438
        %v500 = vpop.f32.mrf.mxu0
        %v501 = vadd.f32 0.0, %v500
        %v502 = vpop.f32.mrf.mxu0
        %v503 = vadd.f32 0.0, %v502
        %504 = vmatmul.bf16.gmra.mxu0 %v441
        %v505 = vpop.f32.mrf.mxu0
        %v506 = vadd.f32 0.0, %v505
        %v507 = vpop.f32.mrf.mxu0
        %v508 = vadd.f32 0.0, %v507
        %509 = vmatmul.bf16.gmra.mxu0 %v444
        %v510 = vpop.f32.mrf.mxu0
        %v511 = vadd.f32 0.0, %v510
        %v512 = vpop.f32.mrf.mxu0
        %v513 = vadd.f32 0.0, %v512
        %514 = vmatmul.bf16.gmra.mxu0 %v447
        %v515 = vpop.f32.mrf.mxu0
        %v516 = vadd.f32 0.0, %v515
        %v517 = vpop.f32.mrf.mxu0
        %v518 = vadd.f32 0.0, %v517
        %519 = vmatmul.bf16.gmra.mxu0 %v450
        %v520 = vpop.f32.mrf.mxu0
        %v521 = vadd.f32 0.0, %v520
        %v522 = vpop.f32.mrf.mxu0
        %v523 = vadd.f32 0.0, %v522
        %524 = vmatmul.bf16.gmra.mxu0 %v453
        %v525 = vpop.f32.mrf.mxu0
        %v526 = vadd.f32 0.0, %v525
        %v527 = vpop.f32.mrf.mxu0
        %v528 = vadd.f32 0.0, %v527
        %529 = vmatmul.bf16.gmra.mxu0 %v456
        %v530 = vpop.f32.mrf.mxu0
        %v531 = vadd.f32 0.0, %v530
        %v532 = vpop.f32.mrf.mxu0
        %v533 = vadd.f32 0.0, %v532
        %534 = vmatmul.bf16.gmra.mxu0 %v459
        %v535 = vpop.f32.mrf.mxu0
        %v536 = vadd.f32 0.0, %v535
        %v537 = vpop.f32.mrf.mxu0
        %v538 = vadd.f32 0.0, %v537
        %539 = vdwg.mxu0
        %540 = vmatpush.bf16.msra.mxu0 0
        %541 = vmatpush.bf16.msra.mxu0 0
        %542 = vmatpush.bf16.msra.mxu0 0
        %543 = vmatpush.bf16.msra.mxu0 0
        %544 = vmatpush.bf16.msra.mxu0 0
        %545 = vmatpush.bf16.msra.mxu0 0
        %546 = vmatpush.bf16.msra.mxu0 0
        %547 = vmatpush.bf16.msra.mxu0 %v416
        %548 = vmatmul.bf16.gmra.mxu0 %v420
        %v549 = vpop.f32.mrf.mxu0
        %v550 = vadd.f32 0.0, %v549
        %v551 = vpop.f32.mrf.mxu0
        %v552 = vadd.f32 0.0, %v551
        %553 = vmatmul.bf16.gmra.mxu0 %v423
        %v554 = vpop.f32.mrf.mxu0
        %v555 = vadd.f32 0.0, %v554
        %v556 = vpop.f32.mrf.mxu0
        %v557 = vadd.f32 0.0, %v556
        %558 = vmatmul.bf16.gmra.mxu0 %v426
        %v559 = vpop.f32.mrf.mxu0
        %v560 = vadd.f32 0.0, %v559
        %v561 = vpop.f32.mrf.mxu0
        %v562 = vadd.f32 0.0, %v561
        %563 = vmatmul.bf16.gmra.mxu0 %v429
        %v564 = vpop.f32.mrf.mxu0
        %v565 = vadd.f32 0.0, %v564
        %v566 = vpop.f32.mrf.mxu0
        %v567 = vadd.f32 0.0, %v566
        %568 = vmatmul.bf16.gmra.mxu0 %v432
        %v569 = vpop.f32.mrf.mxu0
        %v570 = vadd.f32 0.0, %v569
        %v571 = vpop.f32.mrf.mxu0
        %v572 = vadd.f32 0.0, %v571
        %573 = vmatmul.bf16.gmra.mxu0 %v435
        %v574 = vpop.f32.mrf.mxu0
        %v575 = vadd.f32 0.0, %v574
        %v576 = vpop.f32.mrf.mxu0
        %v577 = vadd.f32 0.0, %v576
        %578 = vmatmul.bf16.gmra.mxu0 %v438
        %v579 = vpop.f32.mrf.mxu0
        %v580 = vadd.f32 0.0, %v579
        %v581 = vpop.f32.mrf.mxu0
        %v582 = vadd.f32 0.0, %v581
        %583 = vmatmul.bf16.gmra.mxu0 %v441
        %v584 = vpop.f32.mrf.mxu0
        %v585 = vadd.f32 0.0, %v584
        %v586 = vpop.f32.mrf.mxu0
        %v587 = vadd.f32 0.0, %v586
        %588 = vmatmul.bf16.gmra.mxu0 %v444
        %v589 = vpop.f32.mrf.mxu0
        %v590 = vadd.f32 0.0, %v589
        %v591 = vpop.f32.mrf.mxu0
        %v592 = vadd.f32 0.0, %v591
        %593 = vmatmul.bf16.gmra.mxu0 %v447
        %v594 = vpop.f32.mrf.mxu0
        %v595 = vadd.f32 0.0, %v594
        %v596 = vpop.f32.mrf.mxu0
        %v597 = vadd.f32 0.0, %v596
        %598 = vmatmul.bf16.gmra.mxu0 %v450
        %v599 = vpop.f32.mrf.mxu0
        %v600 = vadd.f32 0.0, %v599
        %v601 = vpop.f32.mrf.mxu0
        %v602 = vadd.f32 0.0, %v601
        %603 = vmatmul.bf16.gmra.mxu0 %v453
        %v604 = vpop.f32.mrf.mxu0
        %v605 = vadd.f32 0.0, %v604
        %v606 = vpop.f32.mrf.mxu0
        %v607 = vadd.f32 0.0, %v606
        %608 = vmatmul.bf16.gmra.mxu0 %v456
        %v609 = vpop.f32.mrf.mxu0
        %v610 = vadd.f32 0.0, %v609
        %v611 = vpop.f32.mrf.mxu0
        %v612 = vadd.f32 0.0, %v611
        %613 = vmatmul.bf16.gmra.mxu0 %v459
        %v614 = vpop.f32.mrf.mxu0
        %v615 = vadd.f32 0.0, %v614
        %v616 = vpop.f32.mrf.mxu0
        %v617 = vadd.f32 0.0, %v616
        %618 = vdwg.mxu0
        %v647 = vunpack.c.l.b16 %v311
        %v648 = vunpack.c.l.b16 %v312
        %v649 = vunpack.c.l.b16 %v313
        %v650 = vunpack.c.l.b16 %v314
        %v651 = vunpack.c.l.b16 %v315
        %v652 = vunpack.c.l.b16 %v316
        %v653 = vunpack.c.l.b16 %v317
        %v654 = vunpack.c.l.b16 %v318
        %v655 = vunpack.c.l.b16 %v319
        %v656 = vunpack.c.l.b16 %v320
        %v657 = vunpack.c.l.b16 %v321
        %v658 = vunpack.c.l.b16 %v322
        %v659 = vunpack.c.l.b16 %v323
        %v660 = vunpack.c.l.b16 %v324
        %v661 = vunpack.c.l.b16 %v325
        %v662 = vunpack.c.l.b16 %v326
        %v663 = vunpack.c.l.b16 %v327
        %v664 = vunpack.c.l.b16 %v328
        %v665 = vunpack.c.l.b16 %v329
        %v666 = vunpack.c.l.b16 %v330
        %v667 = vunpack.c.l.b16 %v331
        %v668 = vunpack.c.l.b16 %v332
        %v669 = vunpack.c.l.b16 %v333
        %v670 = vunpack.c.l.b16 %v334
        %v671 = vunpack.c.l.b16 %v335
        %v672 = vunpack.c.l.b16 %v336
        %v673 = vunpack.c.l.b16 %v337
        %v674 = vunpack.c.l.b16 %v338
        %v675 = vpack.c.b16 %v648, %v647
        %v676 = vpack.c.b16 %v650, %v649
        %v677 = vpack.c.b16 %v652, %v651
        %v678 = vpack.c.b16 %v654, %v653
        %v679 = vpack.c.b16 %v656, %v655
        %v680 = vpack.c.b16 %v658, %v657
        %v681 = vpack.c.b16 %v660, %v659
        %v682 = vpack.c.b16 %v662, %v661
        %v683 = vpack.c.b16 %v664, %v663
        %v684 = vpack.c.b16 %v666, %v665
        %v685 = vpack.c.b16 %v668, %v667
        %v686 = vpack.c.b16 %v670, %v669
        %v687 = vpack.c.b16 %v672, %v671
        %v688 = vpack.c.b16 %v674, %v673
        %v691 = vunpack.c.l.b16 %v281
        %v692 = vunpack.c.h.b16 %v281
        %v693 = vunpack.c.l.b16 %v282
        %v694 = vunpack.c.h.b16 %v282
        %v695 = vpack.c.b16 %v693, %v691
        %v696 = vpack.c.b16 %v694, %v692
        %v700 = vsel %vm234, %v675, 0
        %v703 = vsel %vm234, %v676, 0
        %v706 = vsel %vm234, %v677, 0
        %v709 = vsel %vm234, %v678, 0
        %v712 = vsel %vm234, %v679, 0
        %v715 = vsel %vm234, %v680, 0
        %v718 = vsel %vm234, %v681, 0
        %v721 = vsel %vm234, %v682, 0
        %v724 = vsel %vm234, %v683, 0
        %v727 = vsel %vm234, %v684, 0
        %v730 = vsel %vm234, %v685, 0
        %v733 = vsel %vm234, %v686, 0
        %v736 = vsel %vm234, %v687, 0
        %v739 = vsel %vm234, %v688, 0
        %741 = vmatpush.bf16.msra.mxu0 0
        %742 = vmatpush.bf16.msra.mxu0 0
        %743 = vmatpush.bf16.msra.mxu0 0
        %744 = vmatpush.bf16.msra.mxu0 0
        %745 = vmatpush.bf16.msra.mxu0 0
        %746 = vmatpush.bf16.msra.mxu0 0
        %747 = vmatpush.bf16.msra.mxu0 0
        %748 = vmatpush.bf16.msra.mxu0 %v695
        %749 = vmatmul.bf16.gmra.mxu0 %v700
        %v750 = vpop.f32.mrf.mxu0
        %v751 = vadd.f32 0.0, %v750
        %v752 = vpop.f32.mrf.mxu0
        %v753 = vadd.f32 0.0, %v752
        %754 = vmatmul.bf16.gmra.mxu0 %v703
        %v755 = vpop.f32.mrf.mxu0
        %v756 = vadd.f32 0.0, %v755
        %v757 = vpop.f32.mrf.mxu0
        %v758 = vadd.f32 0.0, %v757
        %759 = vmatmul.bf16.gmra.mxu0 %v706
        %v760 = vpop.f32.mrf.mxu0
        %v761 = vadd.f32 0.0, %v760
        %v762 = vpop.f32.mrf.mxu0
        %v763 = vadd.f32 0.0, %v762
        %764 = vmatmul.bf16.gmra.mxu0 %v709
        %v765 = vpop.f32.mrf.mxu0
        %v766 = vadd.f32 0.0, %v765
        %v767 = vpop.f32.mrf.mxu0
        %v768 = vadd.f32 0.0, %v767
        %769 = vmatmul.bf16.gmra.mxu0 %v712
        %v770 = vpop.f32.mrf.mxu0
        %v771 = vadd.f32 0.0, %v770
        %v772 = vpop.f32.mrf.mxu0
        %v773 = vadd.f32 0.0, %v772
        %774 = vmatmul.bf16.gmra.mxu0 %v715
        %v775 = vpop.f32.mrf.mxu0
        %v776 = vadd.f32 0.0, %v775
        %v777 = vpop.f32.mrf.mxu0
        %v778 = vadd.f32 0.0, %v777
        %779 = vmatmul.bf16.gmra.mxu0 %v718
        %v780 = vpop.f32.mrf.mxu0
        %v781 = vadd.f32 0.0, %v780
        %v782 = vpop.f32.mrf.mxu0
        %v783 = vadd.f32 0.0, %v782
        %784 = vmatmul.bf16.gmra.mxu0 %v721
        %v785 = vpop.f32.mrf.mxu0
        %v786 = vadd.f32 0.0, %v785
        %v787 = vpop.f32.mrf.mxu0
        %v788 = vadd.f32 0.0, %v787
        %789 = vmatmul.bf16.gmra.mxu0 %v724
        %v790 = vpop.f32.mrf.mxu0
        %v791 = vadd.f32 0.0, %v790
        %v792 = vpop.f32.mrf.mxu0
        %v793 = vadd.f32 0.0, %v792
        %794 = vmatmul.bf16.gmra.mxu0 %v727
        %v795 = vpop.f32.mrf.mxu0
        %v796 = vadd.f32 0.0, %v795
        %v797 = vpop.f32.mrf.mxu0
        %v798 = vadd.f32 0.0, %v797
        %799 = vmatmul.bf16.gmra.mxu0 %v730
        %v800 = vpop.f32.mrf.mxu0
        %v801 = vadd.f32 0.0, %v800
        %v802 = vpop.f32.mrf.mxu0
        %v803 = vadd.f32 0.0, %v802
        %804 = vmatmul.bf16.gmra.mxu0 %v733
        %v805 = vpop.f32.mrf.mxu0
        %v806 = vadd.f32 0.0, %v805
        %v807 = vpop.f32.mrf.mxu0
        %v808 = vadd.f32 0.0, %v807
        %809 = vmatmul.bf16.gmra.mxu0 %v736
        %v810 = vpop.f32.mrf.mxu0
        %v811 = vadd.f32 0.0, %v810
        %v812 = vpop.f32.mrf.mxu0
        %v813 = vadd.f32 0.0, %v812
        %814 = vmatmul.bf16.gmra.mxu0 %v739
        %v815 = vpop.f32.mrf.mxu0
        %v816 = vadd.f32 0.0, %v815
        %v817 = vpop.f32.mrf.mxu0
        %v818 = vadd.f32 0.0, %v817
        %819 = vdwg.mxu0
        %820 = vmatpush.bf16.msra.mxu0 0
        %821 = vmatpush.bf16.msra.mxu0 0
        %822 = vmatpush.bf16.msra.mxu0 0
        %823 = vmatpush.bf16.msra.mxu0 0
        %824 = vmatpush.bf16.msra.mxu0 0
        %825 = vmatpush.bf16.msra.mxu0 0
        %826 = vmatpush.bf16.msra.mxu0 0
        %827 = vmatpush.bf16.msra.mxu0 %v696
        %828 = vmatmul.bf16.gmra.mxu0 %v700
        %v829 = vpop.f32.mrf.mxu0
        %v830 = vadd.f32 0.0, %v829
        %v831 = vpop.f32.mrf.mxu0
        %v832 = vadd.f32 0.0, %v831
        %833 = vmatmul.bf16.gmra.mxu0 %v703
        %v834 = vpop.f32.mrf.mxu0
        %v835 = vadd.f32 0.0, %v834
        %v836 = vpop.f32.mrf.mxu0
        %v837 = vadd.f32 0.0, %v836
        %838 = vmatmul.bf16.gmra.mxu0 %v706
        %v839 = vpop.f32.mrf.mxu0
        %v840 = vadd.f32 0.0, %v839
        %v841 = vpop.f32.mrf.mxu0
        %v842 = vadd.f32 0.0, %v841
        %843 = vmatmul.bf16.gmra.mxu0 %v709
        %v844 = vpop.f32.mrf.mxu0
        %v845 = vadd.f32 0.0, %v844
        %v846 = vpop.f32.mrf.mxu0
        %v847 = vadd.f32 0.0, %v846
        %848 = vmatmul.bf16.gmra.mxu0 %v712
        %v849 = vpop.f32.mrf.mxu0
        %v850 = vadd.f32 0.0, %v849
        %v851 = vpop.f32.mrf.mxu0
        %v852 = vadd.f32 0.0, %v851
        %853 = vmatmul.bf16.gmra.mxu0 %v715
        %v854 = vpop.f32.mrf.mxu0
        %v855 = vadd.f32 0.0, %v854
        %v856 = vpop.f32.mrf.mxu0
        %v857 = vadd.f32 0.0, %v856
        %858 = vmatmul.bf16.gmra.mxu0 %v718
        %v859 = vpop.f32.mrf.mxu0
        %v860 = vadd.f32 0.0, %v859
        %v861 = vpop.f32.mrf.mxu0
        %v862 = vadd.f32 0.0, %v861
        %863 = vmatmul.bf16.gmra.mxu0 %v721
        %v864 = vpop.f32.mrf.mxu0
        %v865 = vadd.f32 0.0, %v864
        %v866 = vpop.f32.mrf.mxu0
        %v867 = vadd.f32 0.0, %v866
        %868 = vmatmul.bf16.gmra.mxu0 %v724
        %v869 = vpop.f32.mrf.mxu0
        %v870 = vadd.f32 0.0, %v869
        %v871 = vpop.f32.mrf.mxu0
        %v872 = vadd.f32 0.0, %v871
        %873 = vmatmul.bf16.gmra.mxu0 %v727
        %v874 = vpop.f32.mrf.mxu0
        %v875 = vadd.f32 0.0, %v874
        %v876 = vpop.f32.mrf.mxu0
        %v877 = vadd.f32 0.0, %v876
        %878 = vmatmul.bf16.gmra.mxu0 %v730
        %v879 = vpop.f32.mrf.mxu0
        %v880 = vadd.f32 0.0, %v879
        %v881 = vpop.f32.mrf.mxu0
        %v882 = vadd.f32 0.0, %v881
        %883 = vmatmul.bf16.gmra.mxu0 %v733
        %v884 = vpop.f32.mrf.mxu0
        %v885 = vadd.f32 0.0, %v884
        %v886 = vpop.f32.mrf.mxu0
        %v887 = vadd.f32 0.0, %v886
        %888 = vmatmul.bf16.gmra.mxu0 %v736
        %v889 = vpop.f32.mrf.mxu0
        %v890 = vadd.f32 0.0, %v889
        %v891 = vpop.f32.mrf.mxu0
        %v892 = vadd.f32 0.0, %v891
        %893 = vmatmul.bf16.gmra.mxu0 %v739
        %v894 = vpop.f32.mrf.mxu0
        %v895 = vadd.f32 0.0, %v894
        %v896 = vpop.f32.mrf.mxu0
        %v897 = vadd.f32 0.0, %v896
        %898 = vdwg.mxu0
        %v899 = vpack.c.bf16 %v550, %v471
        %v900 = vpack.c.bf16 %v552, %v473
        %v901 = vpack.c.bf16 %v555, %v476
        %v902 = vpack.c.bf16 %v557, %v478
        %v903 = vpack.c.bf16 %v560, %v481
        %v904 = vpack.c.bf16 %v562, %v483
        %v905 = vpack.c.bf16 %v565, %v486
        %v906 = vpack.c.bf16 %v567, %v488
        %v907 = vpack.c.bf16 %v570, %v491
        %v908 = vpack.c.bf16 %v572, %v493
        %v909 = vpack.c.bf16 %v575, %v496
        %v910 = vpack.c.bf16 %v577, %v498
        %v911 = vpack.c.bf16 %v580, %v501
        %v912 = vpack.c.bf16 %v582, %v503
        %v913 = vpack.c.bf16 %v585, %v506
        %v914 = vpack.c.bf16 %v587, %v508
        %v915 = vpack.c.bf16 %v590, %v511
        %v916 = vpack.c.bf16 %v592, %v513
        %v917 = vpack.c.bf16 %v595, %v516
        %v918 = vpack.c.bf16 %v597, %v518
        %v919 = vpack.c.bf16 %v600, %v521
        %v920 = vpack.c.bf16 %v602, %v523
        %v921 = vpack.c.bf16 %v605, %v526
        %v922 = vpack.c.bf16 %v607, %v528
        %v923 = vpack.c.bf16 %v610, %v531
        %v924 = vpack.c.bf16 %v612, %v533
        %v925 = vpack.c.bf16 %v615, %v536
        %v926 = vpack.c.bf16 %v617, %v538
        %v927 = vpack.c.bf16 %v830, %v751
        %v928 = vpack.c.bf16 %v832, %v753
        %v929 = vpack.c.bf16 %v835, %v756
        %v930 = vpack.c.bf16 %v837, %v758
        %v931 = vpack.c.bf16 %v840, %v761
        %v932 = vpack.c.bf16 %v842, %v763
        %v933 = vpack.c.bf16 %v845, %v766
        %v934 = vpack.c.bf16 %v847, %v768
        %v935 = vpack.c.bf16 %v850, %v771
        %v936 = vpack.c.bf16 %v852, %v773
        %v937 = vpack.c.bf16 %v855, %v776
        %v938 = vpack.c.bf16 %v857, %v778
        %v939 = vpack.c.bf16 %v860, %v781
        %v940 = vpack.c.bf16 %v862, %v783
        %v941 = vpack.c.bf16 %v865, %v786
        %v942 = vpack.c.bf16 %v867, %v788
        %v943 = vpack.c.bf16 %v870, %v791
        %v944 = vpack.c.bf16 %v872, %v793
        %v945 = vpack.c.bf16 %v875, %v796
        %v946 = vpack.c.bf16 %v877, %v798
        %v947 = vpack.c.bf16 %v880, %v801
        %v948 = vpack.c.bf16 %v882, %v803
        %v949 = vpack.c.bf16 %v885, %v806
        %v950 = vpack.c.bf16 %v887, %v808
        %v951 = vpack.c.bf16 %v890, %v811
        %v952 = vpack.c.bf16 %v892, %v813
        %v953 = vpack.c.bf16 %v895, %v816
        %v954 = vpack.c.bf16 %v897, %v818
        %vm955 = vcmask 1043456
        %vm956 = vcmask 785412
        %vm957 = vmor %vm956, %vm955
        %958 = vst.msk [vmem:[%s190] sm:$0xff] %vm957, %v899
        %959 = vst.msk [vmem:[%s190 + $0x8] sm:$0xff] %vm957, %v900
        %960 = vst.msk [vmem:[%s190 + $0x10] sm:$0xff] %vm957, %v901
        %961 = vst.msk [vmem:[%s190 + $0x18] sm:$0xff] %vm957, %v902
        %962 = vst.msk [vmem:[%s190 + $0x20] sm:$0xff] %vm957, %v903
        %963 = vst.msk [vmem:[%s190 + $0x28] sm:$0xff] %vm957, %v904
        %964 = vst.msk [vmem:[%s190 + $0x30] sm:$0xff] %vm957, %v905
        %965 = vst.msk [vmem:[%s190 + $0x38] sm:$0xff] %vm957, %v906
        %966 = vst.msk [vmem:[%s190 + $0x40] sm:$0xff] %vm957, %v907
        %967 = vst.msk [vmem:[%s190 + $0x48] sm:$0xff] %vm957, %v908
        %968 = vst.msk [vmem:[%s190 + $0x50] sm:$0xff] %vm957, %v909
        %969 = vst.msk [vmem:[%s190 + $0x58] sm:$0xff] %vm957, %v910
        %970 = vst.msk [vmem:[%s190 + $0x60] sm:$0xff] %vm957, %v911
        %971 = vst.msk [vmem:[%s190 + $0x68] sm:$0xff] %vm957, %v912
        %972 = vst.msk [vmem:[%s190 + $0x70] sm:$0xff] %vm957, %v913
        %973 = vst.msk [vmem:[%s190 + $0x78] sm:$0xff] %vm957, %v914
        %974 = vst.msk [vmem:[%s190 + $0x80] sm:$0xff] %vm957, %v915
        %975 = vst.msk [vmem:[%s190 + $0x88] sm:$0xff] %vm957, %v916
        %976 = vst.msk [vmem:[%s190 + $0x90] sm:$0xff] %vm957, %v917
        %977 = vst.msk [vmem:[%s190 + $0x98] sm:$0xff] %vm957, %v918
        %978 = vst.msk [vmem:[%s190 + $0xa0] sm:$0xff] %vm957, %v919
        %979 = vst.msk [vmem:[%s190 + $0xa8] sm:$0xff] %vm957, %v920
        %980 = vst.msk [vmem:[%s190 + $0xb0] sm:$0xff] %vm957, %v921
        %981 = vst.msk [vmem:[%s190 + $0xb8] sm:$0xff] %vm957, %v922
        %982 = vst.msk [vmem:[%s190 + $0xc0] sm:$0xff] %vm957, %v923
        %983 = vst.msk [vmem:[%s190 + $0xc8] sm:$0xff] %vm957, %v924
        %984 = vst.msk [vmem:[%s190 + $0xd0] sm:$0xff] %vm957, %v925
        %985 = vst.msk [vmem:[%s190 + $0xd8] sm:$0xff] %vm957, %v926
        %986 = vst.msk [vmem:[%s190 + $0xe0] sm:$0xff] %vm957, %v927
        %987 = vst.msk [vmem:[%s190 + $0xe8] sm:$0xff] %vm957, %v928
        %988 = vst.msk [vmem:[%s190 + $0xf0] sm:$0xff] %vm957, %v929
        %989 = vst.msk [vmem:[%s190 + $0xf8] sm:$0xff] %vm957, %v930
        %990 = vst.msk [vmem:[%s190 + $0x100] sm:$0xff] %vm957, %v931
        %991 = vst.msk [vmem:[%s190 + $0x108] sm:$0xff] %vm957, %v932
        %992 = vst.msk [vmem:[%s190 + $0x110] sm:$0xff] %vm957, %v933
        %993 = vst.msk [vmem:[%s190 + $0x118] sm:$0xff] %vm957, %v934
        %994 = vst.msk [vmem:[%s190 + $0x120] sm:$0xff] %vm957, %v935
        %995 = vst.msk [vmem:[%s190 + $0x128] sm:$0xff] %vm957, %v936
        %996 = vst.msk [vmem:[%s190 + $0x130] sm:$0xff] %vm957, %v937
        %997 = vst.msk [vmem:[%s190 + $0x138] sm:$0xff] %vm957, %v938
        %998 = vst.msk [vmem:[%s190 + $0x140] sm:$0xff] %vm957, %v939
        %999 = vst.msk [vmem:[%s190 + $0x148] sm:$0xff] %vm957, %v940
        %1000 = vst.msk [vmem:[%s190 + $0x150] sm:$0xff] %vm957, %v941
        %1001 = vst.msk [vmem:[%s190 + $0x158] sm:$0xff] %vm957, %v942
        %1002 = vst.msk [vmem:[%s190 + $0x160] sm:$0xff] %vm957, %v943
        %1003 = vst.msk [vmem:[%s190 + $0x168] sm:$0xff] %vm957, %v944
        %1004 = vst.msk [vmem:[%s190 + $0x170] sm:$0xff] %vm957, %v945
        %1005 = vst.msk [vmem:[%s190 + $0x178] sm:$0xff] %vm957, %v946
        %1006 = vst.msk [vmem:[%s190 + $0x180] sm:$0xff] %vm957, %v947
        %1007 = vst.msk [vmem:[%s190 + $0x188] sm:$0xff] %vm957, %v948
        %1008 = vst.msk [vmem:[%s190 + $0x190] sm:$0xff] %vm957, %v949
        %1009 = vst.msk [vmem:[%s190 + $0x198] sm:$0xff] %vm957, %v950
        %1010 = vst.msk [vmem:[%s190 + $0x1a0] sm:$0xff] %vm957, %v951
        %1011 = vst.msk [vmem:[%s190 + $0x1a8] sm:$0xff] %vm957, %v952
        %1012 = vst.msk [vmem:[%s190 + $0x1b0] sm:$0xff] %vm957, %v953
        %1013 = vst.msk [vmem:[%s190 + $0x1b8] sm:$0xff] %vm957, %v954
        %s1014 = sand.u32 %s109, 1
        %s1015 = scalar_lea.sflag [#allocation3], %s1014
        %s1016 = sand.u32 %s109, 1
        %s1017 = smul.addr %s1016, 448
        %s1018 = scalar_lea.vmem [#allocation2], %s1017
        // Predicated region
        $region33: #{tpu_custom_call.1} parent=31 // pred_check
          %p1019 = pneg %p119
        $region34: #{tpu_custom_call.1} parent=31 // pred_check_branch
          %1021 = sbr.rel (%p1019) target = $region36
        $region35: #{tpu_custom_call.1} parent=31 // pred_region
          %s1022 = smul.u32 2, %s22
          %1024 = vsyncadd %s1015, 0
          %s1025 = smul.addr %s1022, 56
          %s1026 = smul.addr %s21, 224
          %s1027 = sadd.s32 %s1025, %s1026
          %s1028 = smul.addr %s1027, 4
          %s1029 = scalar_lea.hbm %s3, %s1028
          %s1030 = sshll.u32 %s1018, 4
          %s1031 = int_to_ptr.vmem [resolvable:$true] %s1030
          %s1032 = sshll.u32 %s1029, 4
          %s1033 = int_to_ptr.hbm [resolvable:$true] %s1032
          %1038 = dma.vmem_to_hbm [thread:$0]  %s1031, 7168, %s1033, %s1015, 128, 128, 8
        $region36: #{tpu_custom_call.1} parent=31 // pred_fallthru
          _
      $region32: #{tpu_custom_call.1} parent=5 // pred_fallthru
        _
      %p1039 = scmp.le.s32.totalorder 2, %s12
      // Predicated region
      $region37: #{tpu_custom_call.1} parent=5 // pred_check
        %p1040 = pneg %p1039
      $region38: #{tpu_custom_call.1} parent=5 // pred_check_branch
        %1042 = sbr.rel (%p1040) target = $region40
      $region39: #{tpu_custom_call.1} parent=5 // pred_region
        %s1043 = ssub.s32 %s12, 2
        // Predicated region
        $region41: #{tpu_custom_call.1} parent=39 // pred_check
          %p1044 = pneg %p125
        $region42: #{tpu_custom_call.1} parent=39 // pred_check_branch
          %1046 = sbr.rel (%p1044) target = $region44
        $region43: #{tpu_custom_call.1} parent=39 // pred_region
          %s1047 = sand.u32 %s110, 1
          %s1048 = scalar_lea.sflag [#allocation3], %s1047
          %s1049 = sand.u32 %s110, 1
          %s1050 = smul.addr %s1049, 448
          %s1051 = scalar_lea.vmem [#allocation2], %s1050
          %1053 = dma.done %s1048, 7168
        $region44: #{tpu_custom_call.1} parent=39 // pred_fallthru
          _
      $region40: #{tpu_custom_call.1} parent=5 // pred_fallthru
        _
    $region6: #{tpu_custom_call.1} parent=1 // loop_footer
      %s16 = sadd.s32 1, %s12
    $region7: #{tpu_custom_call.1} parent=1 // loop_footer_branch
      %11 = sbr.rel target = $region3
    $region8: #{tpu_custom_call.1} parent=1 // loop_exit
      _
    %1054 = vsyncpa [#allocation3], 1
    %s1055 = scalar_lea.sflag [#allocation3], 1
    %1056 = vsyncpa %s1055, 1

</llo_original>
